<compile_context>
chip_gen: v7x
topology: tpu7x:2x2x1
jax: 0.10.0
libtpu: 0.0.40
codegen_flags: <defaults>
</compile_context>

<pallas_src>
import functools

import jax
import jax.numpy as jnp
from jax import lax
from jax.experimental import pallas as pl
from jax.experimental.pallas import tpu as pltpu

_OUT_SUBLANES = 8
_OUT_LANES = 128


def _sgns_loss_kernel(cvec_ref, allt_ref, out_ref, *, valid_batch, tile_b, need_mask):
    # cvec_ref: (TB, C, D), allt_ref: (TB, Np1, D)   (bf16 matmul inputs)
    # out_ref : (8, 128) f32 — independent partial-sum block for this grid step.
    c = cvec_ref[...]
    a = allt_ref[...]

    # Batched contraction over D on the MXU with f32 accumulation: (TB, C, Np1).
    scores = jnp.einsum("bcd,bnd->bcn", c, a, preferred_element_type=jnp.float32)

    # -log(sigmoid(s)) == softplus(-s) == max(-s, 0) + log1p(exp(-|s|))   (stable)
    neg_s = -scores
    nls = jnp.maximum(neg_s, 0.0) + jnp.log1p(jnp.exp(-jnp.abs(neg_s)))

    if need_mask:
        row = lax.broadcasted_iota(jnp.int32, nls.shape, 0) + pl.program_id(0) * tile_b
        nls = jnp.where(row < valid_batch, nls, 0.0)

    block_sum = jnp.sum(nls)  # f32 scalar for this batch tile
    out_ref[...] = jnp.broadcast_to(block_sum, out_ref.shape)


def sgns_cce_loss(cvectors, all_tvectors, *, tile_b=256, matmul_dtype=jnp.bfloat16):
    """cvectors: (B, C, D); all_tvectors: (B, 1+n_negs, D) -> scalar CCE loss."""
    B, C, D = cvectors.shape
    Bn, Np1, Dn = all_tvectors.shape
    assert Bn == B and Dn == D

    tb = max(1, min(tile_b, B))
    num_blocks = pl.cdiv(B, tb)
    b_pad = num_blocks * tb

    cv = cvectors.astype(matmul_dtype)
    at = all_tvectors.astype(matmul_dtype)
    if b_pad != B:
        cv = jnp.pad(cv, ((0, b_pad - B), (0, 0), (0, 0)))
        at = jnp.pad(at, ((0, b_pad - B), (0, 0), (0, 0)))

    kernel = functools.partial(
        _sgns_loss_kernel, valid_batch=B, tile_b=tb, need_mask=(b_pad != B)
    )
    partial = pl.pallas_call(
        kernel,
        out_shape=jax.ShapeDtypeStruct(
            (num_blocks * _OUT_SUBLANES, _OUT_LANES), jnp.float32
        ),
        grid_spec=pltpu.PrefetchScalarGridSpec(
            num_scalar_prefetch=0,
            grid=(num_blocks,),
            in_specs=[
                pl.BlockSpec((tb, C, D), lambda b: (b, 0, 0)),
                pl.BlockSpec((tb, Np1, D), lambda b: (b, 0, 0)),
            ],
            out_specs=pl.BlockSpec((_OUT_SUBLANES, _OUT_LANES), lambda b: (b, 0)),
        ),
        compiler_params=pltpu.CompilerParams(
            dimension_semantics=("parallel",),  # independent per-block outputs
        ),
    )(cv, at)

    per_block = partial.reshape(num_blocks, _OUT_SUBLANES, _OUT_LANES)[:, 0, 0]
    return jnp.sum(per_block) / B


def _reference_loss(cvectors, all_tvectors, *, stable=True):
    scores = jnp.einsum(
        "bcd,bnd->bcn",
        cvectors.astype(jnp.float32),
        all_tvectors.astype(jnp.float32),
    )
    if stable:
        neg_s = -scores
        nls = jnp.maximum(neg_s, 0.0) + jnp.log1p(jnp.exp(-jnp.abs(neg_s)))
    else:
        nls = -jnp.log(jax.nn.sigmoid(scores))  # original PyTorch formulation
    return jnp.mean(jnp.sum(nls, axis=(1, 2)))


if __name__ == "__main__":
    # Small, deterministic setup consistent with SGNS.__init__ / forward
    vocab_size = 100
    embed_dim = 32
    batch = 2
    context = 8
    n_negs = 20

    key = jax.random.PRNGKey(0)
    k_t, k_c, k_ti, k_ci, k_ni = jax.random.split(key, 5)

    # base_model embedding tables (deterministic init; synthetic, no checkpoint)
    tvec_table = jax.random.normal(k_t, (vocab_size, embed_dim), jnp.float32) * 0.1
    cvec_table = jax.random.normal(k_c, (vocab_size, embed_dim), jnp.float32) * 0.1

    # forward() inputs
    titems = jax.random.randint(k_ti, (batch,), 0, vocab_size)             # (B,)
    citems = jax.random.randint(k_ci, (batch, context), 0, vocab_size)     # (B, C)
    # weights=None path: uniform negatives in [0, vocab_size-1), deterministic here
    nitems = jax.random.randint(k_ni, (batch, n_negs), 0, vocab_size - 1)  # (B, n_negs)

    # embedding lookups (glue, plain JAX)
    tvectors = tvec_table[titems]        # (B, D)
    cvectors = cvec_table[citems]        # (B, C, D)
    nvectors = -tvec_table[nitems]       # (B, n_negs, D), .neg()
    all_tvectors = jnp.concatenate([tvectors[:, None, :], nvectors], axis=1)  # (B, 1+n_negs, D)

    loss = jax.block_until_ready(sgns_cce_loss(cvectors, all_tvectors))

    # Tight check: same bf16-cast inputs, same stable log-sigmoid formulation.
    loss_ref_bf = _reference_loss(
        cvectors.astype(jnp.bfloat16), all_tvectors.astype(jnp.bfloat16), stable=True
    )
    assert jnp.allclose(loss, loss_ref_bf, rtol=1e-4, atol=1e-4), (loss, loss_ref_bf)

    # Loose check against the original full-f32 -log(sigmoid(.)) formulation.
    loss_ref_f32 = _reference_loss(cvectors, all_tvectors, stable=False)
    assert jnp.allclose(loss, loss_ref_f32, rtol=2e-2, atol=2e-2), (loss, loss_ref_f32)

    # Second config: ragged batch (B not a multiple of the tile) exercises the
    # in-kernel batch mask and the multi-block "parallel" grid path.
    batch2 = 5
    k2 = jax.random.PRNGKey(1)
    k_ti2, k_ci2, k_ni2 = jax.random.split(k2, 3)
    titems2 = jax.random.randint(k_ti2, (batch2,), 0, vocab_size)
    citems2 = jax.random.randint(k_ci2, (batch2, context), 0, vocab_size)
    nitems2 = jax.random.randint(k_ni2, (batch2, n_negs), 0, vocab_size - 1)
    cvectors2 = cvec_table[citems2]
    all_tvectors2 = jnp.concatenate(
        [tvec_table[titems2][:, None, :], -tvec_table[nitems2]], axis=1
    )

    loss2 = jax.block_until_ready(sgns_cce_loss(cvectors2, all_tvectors2, tile_b=4))
    loss2_ref = _reference_loss(
        cvectors2.astype(jnp.bfloat16), all_tvectors2.astype(jnp.bfloat16), stable=True
    )
    assert jnp.allclose(loss2, loss2_ref, rtol=1e-4, atol=1e-4), (loss2, loss2_ref)

    print("KERNEL_OK")
</pallas_src>

<mosaic_0001>
module attributes {stable_mosaic.version = 11 : i64} {
  func.func @_sgns_loss_kernel(%arg0: i32, %arg1: memref<2x8x32xbf16, #tpu.memory_space<vmem>>, %arg2: memref<2x21x32xbf16, #tpu.memory_space<vmem>>, %arg3: memref<8x128xf32, #tpu.memory_space<vmem>>) attributes {dimension_semantics = [#tpu.dimension_semantics<parallel>], iteration_bounds = array<i64: 1>, scalar_prefetch = 0 : i64, scratch_operands = 0 : i64, tpu.core_type = #tpu.core_type<tc>, window_params = [{transform_indices = @transform_0, window_bounds = array<i64: 2, 8, 32>}, {transform_indices = @transform_1, window_bounds = array<i64: 2, 21, 32>}, {transform_indices = @transform_2, window_bounds = array<i64: 8, 128>}]} {
    %c0 = arith.constant 0 : index
    %c0_0 = arith.constant 0 : index
    %c0_1 = arith.constant 0 : index
    %0 = vector.load %arg1[%c0, %c0_0, %c0_1] : memref<2x8x32xbf16, #tpu.memory_space<vmem>>, vector<2x8x32xbf16>
    %c0_2 = arith.constant 0 : index
    %c0_3 = arith.constant 0 : index
    %c0_4 = arith.constant 0 : index
    %1 = vector.load %arg2[%c0_2, %c0_3, %c0_4] : memref<2x21x32xbf16, #tpu.memory_space<vmem>>, vector<2x21x32xbf16>
    "tpu.trace_start"() <{level = 10 : i32, message = "bcd,bnd->bcn"}> : () -> ()
    %cst = arith.constant dense<0.000000e+00> : vector<2x8x21xf32>
    %2 = tpu.matmul %0, %1, %cst {dimension_numbers = #tpu.dot_dimension_numbers<[2], [2], [1], [1], [0, 0, 0, 1, 1, 1], [0], [0]>} : vector<2x8x32xbf16>, vector<2x21x32xbf16>, vector<2x8x21xf32> -> vector<2x8x21xf32>
    "tpu.trace_stop"() : () -> ()
    %cst_5 = arith.constant 0.000000e+00 : f32
    %3 = vector.broadcast %cst_5 : f32 to vector<2x8x21xf32>
    %4 = arith.subf %3, %2 : vector<2x8x21xf32>
    %cst_6 = arith.constant 0.000000e+00 : f32
    %5 = vector.broadcast %cst_6 : f32 to vector<2x8x21xf32>
    %6 = arith.maximumf %4, %5 : vector<2x8x21xf32>
    %7 = math.absf %4 : vector<2x8x21xf32>
    %cst_7 = arith.constant 0.000000e+00 : f32
    %8 = vector.broadcast %cst_7 : f32 to vector<2x8x21xf32>
    %9 = arith.subf %8, %7 : vector<2x8x21xf32>
    %10 = math.exp %9 : vector<2x8x21xf32>
    %11 = math.log1p %10 : vector<2x8x21xf32>
    %12 = arith.addf %6, %11 : vector<2x8x21xf32>
    %13 = vector.shape_cast %12 : vector<2x8x21xf32> to vector<1x2x8x21xf32>
    %cst_8 = arith.constant dense<0.000000e+00> : vector<1xf32>
    %14 = vector.multi_reduction <add>, %13, %cst_8 [1, 2, 3] : vector<1x2x8x21xf32> to vector<1xf32>
    %15 = vector.shape_cast %14 : vector<1xf32> to vector<1x1x1x1xf32>
    %16 = vector.extract %15[0, 0, 0, 0] : f32 from vector<1x1x1x1xf32>
    %17 = vector.broadcast %16 : f32 to vector<8x128xf32>
    %c0_9 = arith.constant 0 : index
    %c0_10 = arith.constant 0 : index
    %18 = vector.load %arg3[%c0_9, %c0_10] : memref<8x128xf32, #tpu.memory_space<vmem>>, vector<8x128xf32>
    tpu.vector_store %arg3[%c0_9, %c0_10], %17 {strides = array<i32>} : memref<8x128xf32, #tpu.memory_space<vmem>>, vector<8x128xf32>,
    return
  }
  func.func @transform_0(%arg0: i32) -> (i32, i32, i32) {
    %c0_i32 = arith.constant 0 : i32
    %c0_i32_0 = arith.constant 0 : i32
    %c0_i32_1 = arith.constant 0 : i32
    return %arg0, %c0_i32, %c0_i32_0 : i32, i32, i32
  }
  func.func @transform_1(%arg0: i32) -> (i32, i32, i32) {
    %c0_i32 = arith.constant 0 : i32
    %c0_i32_0 = arith.constant 0 : i32
    %c0_i32_1 = arith.constant 0 : i32
    return %arg0, %c0_i32, %c0_i32_0 : i32, i32, i32
  }
  func.func @transform_2(%arg0: i32) -> (i32, i32) {
    %c0_i32 = arith.constant 0 : i32
    %c0_i32_0 = arith.constant 0 : i32
    return %arg0, %c0_i32 : i32, i32
  }
}

</mosaic_0001>

<llo_original>
// kernel: tpu_custom_call.1
$region0: #{tpu_custom_call.1}
  #allocation0 [shape = 'u32[]', space=smem, size = 0x4, offset = 0x4, fixed_abs, tag = 'smem constant byte address 0x4 - core index']
  #allocation1 [shape = 'u32[144,128]{1,0:T(1,128)}', space=vmem, size = 0x12000, scoped, tag = 'internal scratch']
  %s0 = inlined_call_operand.vmem [shape: bf16[2,8,32], index: 0, kind: input, shape index: {}]
  %s1 = inlined_call_operand.vmem [shape: bf16[2,21,32], index: 1, kind: input, shape index: {}]
  %s2 = inlined_call_operand.hbm [shape: f32[8,128], index: 2, kind: output, shape index: {}]
  %s3 = sld [smem:[#allocation0]]
  $region18: #{tpu_custom_call.1} parent=0
    _
  %s5 = ssub.s32 1, %s3
  %s6 = scalar_select 0, %s5, %s3
  $region1: #{tpu_custom_call.1} parent=0
    #allocation2 [shape = 'u8[4096]{0}', space=vmem, size = 0x1000, scoped, tag = 'output window, operand 0, single buffered']
    #allocation3 [shape = 's32[1]{0}', space=sflag, size = 0x4, scoped, tag = 'scoped memory for tpu_custom_call.1']
    %7 = vsyncpa [#allocation3], 0
    // Predicated region
    $region2: #{tpu_custom_call.1} parent=1 // pred_check
      _
    $region3: #{tpu_custom_call.1} parent=1 // pred_check_branch
      %9 = sbr.rel (0) target = $region5
    $region4: #{tpu_custom_call.1} parent=1 // pred_region
      _
    $region5: #{tpu_custom_call.1} parent=1 // pred_fallthru
      _
    // Predicated region
    $region6: #{tpu_custom_call.1} parent=1 // pred_check
      _
    $region7: #{tpu_custom_call.1} parent=1 // pred_check_branch
      %11 = sbr.rel (0) target = $region9
    $region8: #{tpu_custom_call.1} parent=1 // pred_region
      _
    $region9: #{tpu_custom_call.1} parent=1 // pred_fallthru
      _
    %v13 = vld [vmem:[%s0] sm:$0xf]
    %v14 = vld [vmem:[%s0 + $0x4] sm:$0xf]
    %v15 = vld [vmem:[%s1] sm:$0xf]
    %v16 = vld [vmem:[%s1 + $0x4] sm:$0xf]
    %v17 = vld [vmem:[%s1 + $0x8] sm:$0x7]
    %v18 = vld [vmem:[%s1 + $0xc] sm:$0xf]
    %v19 = vld [vmem:[%s1 + $0x10] sm:$0xf]
    %v20 = vld [vmem:[%s1 + $0x14] sm:$0x7]
    %v24 = vunpack.c.l.b16 %v15
    %v25 = vunpack.c.l.b16 %v16
    %v26 = vunpack.c.l.b16 %v17
    %v27 = vpack.c.b16 %v25, %v24
    %v28 = vpack.c.b16 %v26, %v26
    %vm29 = vcmask 261120
    %v31 = vsel %vm29, %v13, 0
    %v34 = vsel %vm29, %v27, 0
    %v37 = vsel %vm29, %v28, 0
    %39 = vmatprep.subr.bf16.mxu0 0
    %40 = vmatpush1.bf16.xpose.msra.mxu0 %v34
    %41 = vmatprep.subr.bf16.mxu0 0
    %42 = vmatpush1.bf16.xpose.msra.mxu0 %v37
    %43 = vmatprep.subr.bf16.mxu0 0
    %44 = vmatpush1.bf16.xpose.msra.mxu0 0
    %45 = vmatprep.subr.bf16.mxu0 0
    %46 = vmatpush1.bf16.xpose.msra.mxu0 0
    %47 = vmatprep.subr.bf16.mxu0 0
    %48 = vmatpush1.bf16.xpose.msra.mxu0 0
    %49 = vmatprep.subr.bf16.mxu0 0
    %50 = vmatpush1.bf16.xpose.msra.mxu0 0
    %51 = vmatprep.subr.bf16.mxu0 0
    %52 = vmatpush1.bf16.xpose.msra.mxu0 0
    %53 = vmatprep.subr.bf16.mxu0 0
    %54 = vmatpush1.bf16.xpose.msra.mxu0 0
    %55 = vmatprep.subr.bf16.mxu0 0
    %56 = vmatpush1.bf16.xpose.msra.mxu0 0
    %57 = vmatprep.subr.bf16.mxu0 0
    %58 = vmatpush1.bf16.xpose.msra.mxu0 0
    %59 = vmatprep.subr.bf16.mxu0 0
    %60 = vmatpush1.bf16.xpose.msra.mxu0 0
    %61 = vmatprep.subr.bf16.mxu0 0
    %62 = vmatpush1.bf16.xpose.msra.mxu0 0
    %63 = vmatprep.subr.bf16.mxu0 0
    %64 = vmatpush1.bf16.xpose.msra.mxu0 0
    %65 = vmatprep.subr.bf16.mxu0 0
    %66 = vmatpush1.bf16.xpose.msra.mxu0 0
    %67 = vmatprep.subr.bf16.mxu0 0
    %68 = vmatpush1.bf16.xpose.msra.mxu0 0
    %69 = vmatprep.subr.bf16.mxu0 0
    %70 = vmatpush1.bf16.xpose.msra.mxu0 0
    %71 = vmatprep.mubr.bf16.mxu0 0
    %72 = vmatmul.mubr.bf16.gmra.mrb[0].mxu0 %v31
    %v73 = vpop.f32.mrb[0].mxu0
    %v74 = vadd.f32 0.0, %v73
    %v75 = vpop.f32.mrb[0].mxu0
    %v76 = vpop.f32.mrb[0].mxu0
    %v77 = vpop.f32.mrb[0].mxu0
    %78 = vdwg.mxu0
    %v82 = vunpack.c.l.b16 %v18
    %v83 = vunpack.c.l.b16 %v19
    %v84 = vunpack.c.l.b16 %v20
    %v85 = vpack.c.b16 %v83, %v82
    %v86 = vpack.c.b16 %v84, %v84
    %v88 = vsel %vm29, %v14, 0
    %v91 = vsel %vm29, %v85, 0
    %v94 = vsel %vm29, %v86, 0
    %96 = vmatprep.subr.bf16.mxu0 0
    %97 = vmatpush1.bf16.xpose.msra.mxu0 %v91
    %98 = vmatprep.subr.bf16.mxu0 0
    %99 = vmatpush1.bf16.xpose.msra.mxu0 %v94
    %100 = vmatprep.subr.bf16.mxu0 0
    %101 = vmatpush1.bf16.xpose.msra.mxu0 0
    %102 = vmatprep.subr.bf16.mxu0 0
    %103 = vmatpush1.bf16.xpose.msra.mxu0 0
    %104 = vmatprep.subr.bf16.mxu0 0
    %105 = vmatpush1.bf16.xpose.msra.mxu0 0
    %106 = vmatprep.subr.bf16.mxu0 0
    %107 = vmatpush1.bf16.xpose.msra.mxu0 0
    %108 = vmatprep.subr.bf16.mxu0 0
    %109 = vmatpush1.bf16.xpose.msra.mxu0 0
    %110 = vmatprep.subr.bf16.mxu0 0
    %111 = vmatpush1.bf16.xpose.msra.mxu0 0
    %112 = vmatprep.subr.bf16.mxu0 0
    %113 = vmatpush1.bf16.xpose.msra.mxu0 0
    %114 = vmatprep.subr.bf16.mxu0 0
    %115 = vmatpush1.bf16.xpose.msra.mxu0 0
    %116 = vmatprep.subr.bf16.mxu0 0
    %117 = vmatpush1.bf16.xpose.msra.mxu0 0
    %118 = vmatprep.subr.bf16.mxu0 0
    %119 = vmatpush1.bf16.xpose.msra.mxu0 0
    %120 = vmatprep.subr.bf16.mxu0 0
    %121 = vmatpush1.bf16.xpose.msra.mxu0 0
    %122 = vmatprep.subr.bf16.mxu0 0
    %123 = vmatpush1.bf16.xpose.msra.mxu0 0
    %124 = vmatprep.subr.bf16.mxu0 0
    %125 = vmatpush1.bf16.xpose.msra.mxu0 0
    %126 = vmatprep.subr.bf16.mxu0 0
    %127 = vmatpush1.bf16.xpose.msra.mxu0 0
    %128 = vmatprep.mubr.bf16.mxu0 0
    %129 = vmatmul.mubr.bf16.gmra.mrb[0].mxu0 %v88
    %v130 = vpop.f32.mrb[0].mxu0
    %v131 = vadd.f32 0.0, %v130
    %v132 = vpop.f32.mrb[0].mxu0
    %v133 = vpop.f32.mrb[0].mxu0
    %v134 = vpop.f32.mrb[0].mxu0
    %135 = vdwg.mxu0
    %v136 = vsub.f32 0.0, %v74
    %v137 = vsub.f32 0.0, %v131
    %v138 = vmax.f32 %v136, 0.0
    %v139 = vmax.f32 %v137, 0.0
    %v140 = vand.u32 2147483647, %v136
    %v141 = vand.u32 2147483647, %v137
    %v142 = vsub.f32 0.0, %v140
    %v143 = vsub.f32 0.0, %v141
    %v144 = vmul.f32 %v142, 1.442695
    %v145 = vpow.pop %v144
    %v146 = vmul.f32 %v143, 1.442695
    %v147 = vpow.pop %v146
    %v148 = vadd.f32 %v145, 1.0
    %v149 = vlog2.pop %v148
    %v150 = vmul.f32 %v149, 0.6931472
    %v151 = vmul.f32 -0.5, %v145
    %v152 = vadd.f32 %v151, 1.0
    %v153 = vmul.f32 %v152, %v145
    %v154 = vand.u32 2147483647, %v145
    %vm155 = vcmp.lt.f32.partialorder %v154, 0.0004427343
    %v156 = vsel %vm155, %v153, %v150
    %v157 = vadd.f32 %v147, 1.0
    %v158 = vlog2.pop %v157
    %v159 = vmul.f32 %v158, 0.6931472
    %v160 = vmul.f32 -0.5, %v147
    %v161 = vadd.f32 %v160, 1.0
    %v162 = vmul.f32 %v161, %v147
    %v163 = vand.u32 2147483647, %v147
    %vm164 = vcmp.lt.f32.partialorder %v163, 0.0004427343
    %v165 = vsel %vm164, %v162, %v159
    %v166 = vadd.f32 %v138, %v156
    %v167 = vadd.f32 %v139, %v165
    %vm168 = vcmask 171008
    %v169 = vsel %vm168, %v166, 0.0
    %v170 = vsel %vm168, %v167, 0.0
    %v171 = vadd.f32 %v169, %v170
    %172 = vadd.xlane.f32.xlu0 %v171
    %v173 = vpop.xlane.xlu0 %172
    %v174 = vrot.slane %v173, 4
    %v175 = vadd.f32 %v173, %v174
    %v176 = vrot.slane %v175, 2
    %v177 = vadd.f32 %v175, %v176
    %v178 = vrot.slane %v177, 1
    %v179 = vadd.f32 %v177, %v178
    %s180 = vtos %v179
    %v181 = vstv %s180
    %182 = vst [vmem:[#allocation2] sm:$0xff] %v181
    // Predicated region
    $region10: #{tpu_custom_call.1} parent=1 // pred_check
      _
    $region11: #{tpu_custom_call.1} parent=1 // pred_check_branch
      %184 = sbr.rel (0) target = $region13
    $region12: #{tpu_custom_call.1} parent=1 // pred_region
      %s186 = ssub.s32 128, 128
      %187 = vsyncadd [#allocation3], %s186
      %s189 = sshll.u32 [#allocation2], 4
      %s190 = int_to_ptr.vmem [resolvable:$true] %s189
      %192 = dma.vmem_to_hbm [thread:$0]  %s190, 128, %s2, [#allocation3]
    $region13: #{tpu_custom_call.1} parent=1 // pred_fallthru
      _
    // Predicated region
    $region14: #{tpu_custom_call.1} parent=1 // pred_check
      _
    $region15: #{tpu_custom_call.1} parent=1 // pred_check_branch
      %194 = sbr.rel (0) target = $region17
    $region16: #{tpu_custom_call.1} parent=1 // pred_region
      %195 = dma.done [#allocation3], 128
    $region17: #{tpu_custom_call.1} parent=1 // pred_fallthru
      _
    %196 = vsyncpa [#allocation3], 1

</llo_original>
